<compile_context>
chip_gen: v7x
topology: tpu7x:2x2x1
jax: 0.10.0
libtpu: 0.0.40
codegen_flags: <defaults>
</compile_context>

<pallas_src>
import jax
import jax.numpy as jnp
from jax import lax
from jax.experimental import pallas as pl
from jax.experimental.pallas import tpu as pltpu


# Contract the last axis of both operands:  [M,K] x [N,K] -> [M,N]
# (i.e. a "transposed-RHS" matmul, which the MXU handles natively).
_DN_LAST_LAST = (((1,), (1,)), ((), ()))


def lb2_kernel(x_ref, w1_ref, w2_ref, o_ref):
    # h = x @ W1^T   -> [tm, hidden_p], f32 accumulation on the MXU.
    h = lax.dot_general(
        x_ref[...], w1_ref[...],
        dimension_numbers=_DN_LAST_LAST,
        preferred_element_type=jnp.float32,
    )
    # y = h @ W2^T   -> [tm, out_p]; cast h back to the weight dtype so the
    # second matmul also takes the bf16 MXU path (f32 accumulate).
    y = lax.dot_general(
        h.astype(w2_ref.dtype), w2_ref[...],
        dimension_numbers=_DN_LAST_LAST,
        preferred_element_type=jnp.float32,
    )
    o_ref[...] = y.astype(o_ref.dtype)


def _round_up(v, m):
    return (v + m - 1) // m * m


def lb2_forward(x, w1, w2, *, compute_dtype=jnp.bfloat16, block_rows=512):
    """x: [N, input_dim], w1: [hidden, input_dim], w2: [out_dim, hidden]."""
    n, in_dim = x.shape
    hidden, in_dim2 = w1.shape
    out_dim, hidden2 = w2.shape
    assert in_dim == in_dim2 and hidden == hidden2

    # Lane-dense padding: feature dims to multiples of 128 (lanes), rows to a
    # multiple of 8 (sublanes). Zero padding is exact for these matmuls.
    in_p = _round_up(in_dim, 128)
    hid_p = _round_up(hidden, 128)
    out_p = _round_up(out_dim, 128)

    tm = min(block_rows, _round_up(n, 8))      # row tile (multiple of 8)
    n_p = _round_up(n, tm)

    xp = jnp.zeros((n_p, in_p), compute_dtype).at[:n, :in_dim].set(
        x.astype(compute_dtype))
    w1p = jnp.zeros((hid_p, in_p), compute_dtype).at[:hidden, :in_dim].set(
        w1.astype(compute_dtype))
    w2p = jnp.zeros((out_p, hid_p), compute_dtype).at[:out_dim, :hidden].set(
        w2.astype(compute_dtype))

    grid = (n_p // tm,)

    itemsize = jnp.dtype(compute_dtype).itemsize
    cost = pl.CostEstimate(
        flops=2 * n_p * in_p * hid_p + 2 * n_p * hid_p * out_p,
        transcendentals=0,
        bytes_accessed=(xp.size + w1p.size + w2p.size) * itemsize
        + n_p * out_p * 4,
    )

    out = pl.pallas_call(
        lb2_kernel,
        out_shape=jax.ShapeDtypeStruct((n_p, out_p), jnp.float32),
        grid=grid,
        in_specs=[
            # x: tiled over rows, pipelined.
            pl.BlockSpec((tm, in_p), lambda i: (i, 0),
                         memory_space=pltpu.MemorySpace.VMEM),
            # Weights: constant block index -> stay resident in VMEM.
            pl.BlockSpec((hid_p, in_p), lambda i: (0, 0),
                         memory_space=pltpu.MemorySpace.VMEM),
            pl.BlockSpec((out_p, hid_p), lambda i: (0, 0),
                         memory_space=pltpu.MemorySpace.VMEM),
        ],
        out_specs=pl.BlockSpec((tm, out_p), lambda i: (i, 0),
                               memory_space=pltpu.MemorySpace.VMEM),
        compiler_params=pltpu.CompilerParams(
            dimension_semantics=("parallel",)),
        cost_estimate=cost,
    )(xp, w1p, w2p)

    # Slice off padding; return in the input dtype (fp32 for the demo).
    return out[:n, :out_dim].astype(x.dtype)


def _reference_bf16(x, w1, w2, compute_dtype=jnp.bfloat16):
    """Reference with the same bf16-input / f32-accumulate semantics."""
    xb = x.astype(compute_dtype).astype(jnp.float32)
    w1b = w1.astype(compute_dtype).astype(jnp.float32)
    w2b = w2.astype(compute_dtype).astype(jnp.float32)
    h = xb @ w1b.T
    hb = h.astype(compute_dtype).astype(jnp.float32)
    return (hb @ w2b.T).astype(x.dtype)


def _reference_f32(x, w1, w2):
    return (x @ w1.T) @ w2.T


if __name__ == "__main__":
    # Shapes consistent with LB2(input_dim, hidden_units, output_dim, bias=False)
    N, INPUT_DIM, HIDDEN, OUT_DIM = 8, 32, 64, 16

    key = jax.random.PRNGKey(0)
    kx, k1, k2 = jax.random.split(key, 3)

    x = jax.random.normal(kx, (N, INPUT_DIM), dtype=jnp.float32)
    # Deterministic parameter init (synthetic; mimics nn.Linear weight shapes).
    w1 = jax.random.uniform(k1, (HIDDEN, INPUT_DIM), dtype=jnp.float32,
                            minval=-1.0 / INPUT_DIM ** 0.5,
                            maxval=1.0 / INPUT_DIM ** 0.5)
    w2 = jax.random.uniform(k2, (OUT_DIM, HIDDEN), dtype=jnp.float32,
                            minval=-1.0 / HIDDEN ** 0.5,
                            maxval=1.0 / HIDDEN ** 0.5)

    out = lb2_forward(x, w1, w2)
    out = jax.block_until_ready(out)
    assert out.shape == (N, OUT_DIM)

    # Tight check against a reference with identical bf16/f32 semantics.
    ref_bf16 = _reference_bf16(x, w1, w2)
    assert jnp.allclose(out, ref_bf16, atol=2e-3, rtol=2e-3)

    # Loose check against the pure-fp32 PyTorch-equivalent math.
    ref_f32 = _reference_f32(x, w1, w2)
    assert jnp.allclose(out, ref_f32, atol=5e-2, rtol=5e-2)

    print("KERNEL_OK")
</pallas_src>

<mosaic_0001>
module attributes {stable_mosaic.version = 11 : i64} {
  func.func @lb2_kernel(%arg0: i32, %arg1: memref<8x128xbf16, #tpu.memory_space<vmem>>, %arg2: memref<128x128xbf16, #tpu.memory_space<vmem>>, %arg3: memref<128x128xbf16, #tpu.memory_space<vmem>>, %arg4: memref<8x128xf32, #tpu.memory_space<vmem>>) attributes {dimension_semantics = [#tpu.dimension_semantics<parallel>], iteration_bounds = array<i64: 1>, scalar_prefetch = 0 : i64, scratch_operands = 0 : i64, tpu.core_type = #tpu.core_type<tc>, window_params = [{transform_indices = @transform_0, window_bounds = array<i64: 8, 128>}, {pipeline_mode = #tpu.pipeline_mode<synchronous>, transform_indices = @transform_1, window_bounds = array<i64: 128, 128>}, {pipeline_mode = #tpu.pipeline_mode<synchronous>, transform_indices = @transform_2, window_bounds = array<i64: 128, 128>}, {transform_indices = @transform_3, window_bounds = array<i64: 8, 128>}]} {
    %c0 = arith.constant 0 : index
    %c0_0 = arith.constant 0 : index
    %0 = vector.load %arg1[%c0, %c0_0] : memref<8x128xbf16, #tpu.memory_space<vmem>>, vector<8x128xbf16>
    %c0_1 = arith.constant 0 : index
    %c0_2 = arith.constant 0 : index
    %1 = vector.load %arg2[%c0_1, %c0_2] : memref<128x128xbf16, #tpu.memory_space<vmem>>, vector<128x128xbf16>
    %cst = arith.constant dense<0.000000e+00> : vector<8x128xf32>
    %2 = tpu.matmul %0, %1, %cst {dimension_numbers = #tpu.dot_dimension_numbers<[1], [1], [0], [0], [0, 0, 1, 0], [], []>} : vector<8x128xbf16>, vector<128x128xbf16>, vector<8x128xf32> -> vector<8x128xf32>
    %3 = arith.truncf %2 : vector<8x128xf32> to vector<8x128xbf16>
    %c0_3 = arith.constant 0 : index
    %c0_4 = arith.constant 0 : index
    %4 = vector.load %arg3[%c0_3, %c0_4] : memref<128x128xbf16, #tpu.memory_space<vmem>>, vector<128x128xbf16>
    %cst_5 = arith.constant dense<0.000000e+00> : vector<8x128xf32>
    %5 = tpu.matmul %3, %4, %cst_5 {dimension_numbers = #tpu.dot_dimension_numbers<[1], [1], [0], [0], [0, 0, 1, 0], [], []>} : vector<8x128xbf16>, vector<128x128xbf16>, vector<8x128xf32> -> vector<8x128xf32>
    %c0_6 = arith.constant 0 : index
    %c0_7 = arith.constant 0 : index
    %6 = vector.load %arg4[%c0_6, %c0_7] : memref<8x128xf32, #tpu.memory_space<vmem>>, vector<8x128xf32>
    tpu.vector_store %arg4[%c0_6, %c0_7], %5 {strides = array<i32>} : memref<8x128xf32, #tpu.memory_space<vmem>>, vector<8x128xf32>,
    return
  }
  func.func @transform_0(%arg0: i32) -> (i32, i32) {
    %c0_i32 = arith.constant 0 : i32
    %c0_i32_0 = arith.constant 0 : i32
    return %arg0, %c0_i32 : i32, i32
  }
  func.func @transform_1(%arg0: i32) -> (i32, i32) {
    %c0_i32 = arith.constant 0 : i32
    %c0_i32_0 = arith.constant 0 : i32
    %c0_i32_1 = arith.constant 0 : i32
    return %c0_i32, %c0_i32_0 : i32, i32
  }
  func.func @transform_2(%arg0: i32) -> (i32, i32) {
    %c0_i32 = arith.constant 0 : i32
    %c0_i32_0 = arith.constant 0 : i32
    %c0_i32_1 = arith.constant 0 : i32
    return %c0_i32, %c0_i32_0 : i32, i32
  }
  func.func @transform_3(%arg0: i32) -> (i32, i32) {
    %c0_i32 = arith.constant 0 : i32
    %c0_i32_0 = arith.constant 0 : i32
    return %arg0, %c0_i32 : i32, i32
  }
}

</mosaic_0001>

<llo_original>
// kernel: tpu_custom_call.1
$region0: #{tpu_custom_call.1}
  #allocation0 [shape = 'u32[]', space=smem, size = 0x4, offset = 0x4, fixed_abs, tag = 'smem constant byte address 0x4 - core index']
  #allocation1 [shape = 'u32[144,128]{1,0:T(1,128)}', space=vmem, size = 0x12000, scoped, tag = 'internal scratch']
  %s0 = inlined_call_operand.hbm [shape: bf16[8,128], index: 0, kind: input, shape index: {}]
  %s1 = inlined_call_operand.hbm [shape: bf16[128,128], index: 1, kind: input, shape index: {}]
  %s2 = inlined_call_operand.hbm [shape: bf16[128,128], index: 2, kind: input, shape index: {}]
  %s3 = inlined_call_operand.hbm [shape: f32[8,128], index: 3, kind: output, shape index: {}]
  %s4 = sld [smem:[#allocation0]]
  $region34: #{tpu_custom_call.1} parent=0
    _
  %s6 = ssub.s32 1, %s4
  %s7 = scalar_select 0, %s6, %s4
  $region1: #{tpu_custom_call.1} parent=0
    #allocation2 [shape = 'u8[2048]{0}', space=vmem, size = 0x800, scoped, tag = 'input window, operand 0, single buffered']
    #allocation3 [shape = 's32[1]{0}', space=sflag, size = 0x4, scoped, tag = 'scoped memory for tpu_custom_call.1']
    #allocation4 [shape = 's32[1]{0}', space=sflag, size = 0x4, scoped, tag = 'scoped memory for tpu_custom_call.1']
    #allocation5 [shape = 'u8[32768]{0}', space=vmem, size = 0x8000, scoped, tag = 'input window, operand 1, single buffered']
    #allocation6 [shape = 's32[1]{0}', space=sflag, size = 0x4, scoped, tag = 'scoped memory for tpu_custom_call.1']
    #allocation7 [shape = 'u8[32768]{0}', space=vmem, size = 0x8000, scoped, tag = 'input window, operand 2, single buffered']
    #allocation8 [shape = 'u8[4096]{0}', space=vmem, size = 0x1000, scoped, tag = 'output window, operand 0, single buffered']
    %8 = vsyncpa [#allocation3], 0
    %9 = vsyncpa [#allocation6], 0
    %10 = vsyncpa [#allocation4], 0
    // Predicated region
    $region2: #{tpu_custom_call.1} parent=1 // pred_check
      _
    $region3: #{tpu_custom_call.1} parent=1 // pred_check_branch
      %12 = sbr.rel (0) target = $region5
    $region4: #{tpu_custom_call.1} parent=1 // pred_region
      %s14 = ssub.s32 64, 64
      %15 = vsyncadd [#allocation3], %s14
      %s17 = sshll.u32 [#allocation2], 4
      %s18 = int_to_ptr.vmem [resolvable:$true] %s17
      %20 = dma.hbm_to_vmem [thread:$0]  %s0, 64, %s18, [#allocation3]
    $region5: #{tpu_custom_call.1} parent=1 // pred_fallthru
      _
    // Predicated region
    $region6: #{tpu_custom_call.1} parent=1 // pred_check
      _
    $region7: #{tpu_custom_call.1} parent=1 // pred_check_branch
      %22 = sbr.rel (0) target = $region9
    $region8: #{tpu_custom_call.1} parent=1 // pred_region
      %s24 = ssub.s32 1024, 1024
      %25 = vsyncadd [#allocation6], %s24
      %s26 = sshll.u32 [#allocation5], 4
      %s27 = int_to_ptr.vmem [resolvable:$true] %s26
      %32 = dma.hbm_to_vmem [thread:$0]  %s1, 1024, %s27, [#allocation6], 64, 64, 4
    $region9: #{tpu_custom_call.1} parent=1 // pred_fallthru
      _
    // Predicated region
    $region10: #{tpu_custom_call.1} parent=1 // pred_check
      _
    $region11: #{tpu_custom_call.1} parent=1 // pred_check_branch
      %34 = sbr.rel (0) target = $region13
    $region12: #{tpu_custom_call.1} parent=1 // pred_region
      %s36 = ssub.s32 1024, 1024
      %37 = vsyncadd [#allocation6], %s36
      %s38 = sshll.u32 [#allocation7], 4
      %s39 = int_to_ptr.vmem [resolvable:$true] %s38
      %44 = dma.hbm_to_vmem [thread:$0]  %s2, 1024, %s39, [#allocation6], 64, 64, 4
    $region13: #{tpu_custom_call.1} parent=1 // pred_fallthru
      _
    // Predicated region
    $region14: #{tpu_custom_call.1} parent=1 // pred_check
      _
    $region15: #{tpu_custom_call.1} parent=1 // pred_check_branch
      %46 = sbr.rel (0) target = $region17
    $region16: #{tpu_custom_call.1} parent=1 // pred_region
      %47 = dma.done [#allocation3], 64
    $region17: #{tpu_custom_call.1} parent=1 // pred_fallthru
      _
    // Predicated region
    $region18: #{tpu_custom_call.1} parent=1 // pred_check
      _
    $region19: #{tpu_custom_call.1} parent=1 // pred_check_branch
      %49 = sbr.rel (0) target = $region21
    $region20: #{tpu_custom_call.1} parent=1 // pred_region
      %50 = dma.done [#allocation6], 1024
    $region21: #{tpu_custom_call.1} parent=1 // pred_fallthru
      _
    // Predicated region
    $region22: #{tpu_custom_call.1} parent=1 // pred_check
      _
    $region23: #{tpu_custom_call.1} parent=1 // pred_check_branch
      %52 = sbr.rel (0) target = $region25
    $region24: #{tpu_custom_call.1} parent=1 // pred_region
      %53 = dma.done [#allocation6], 1024
    $region25: #{tpu_custom_call.1} parent=1 // pred_fallthru
      _
    %v55 = vld [vmem:[#allocation2] sm:$0xf]
    %v56 = vld [vmem:[#allocation5] sm:$0xf]
    %v57 = vld [vmem:[#allocation5 + $0x4] sm:$0xf]
    %v58 = vld [vmem:[#allocation5 + $0x8] sm:$0xf]
    %v59 = vld [vmem:[#allocation5 + $0xc] sm:$0xf]
    %v60 = vld [vmem:[#allocation5 + $0x10] sm:$0xf]
    %v61 = vld [vmem:[#allocation5 + $0x14] sm:$0xf]
    %v62 = vld [vmem:[#allocation5 + $0x18] sm:$0xf]
    %v63 = vld [vmem:[#allocation5 + $0x1c] sm:$0xf]
    %v64 = vld [vmem:[#allocation5 + $0x20] sm:$0xf]
    %v65 = vld [vmem:[#allocation5 + $0x24] sm:$0xf]
    %v66 = vld [vmem:[#allocation5 + $0x28] sm:$0xf]
    %v67 = vld [vmem:[#allocation5 + $0x2c] sm:$0xf]
    %v68 = vld [vmem:[#allocation5 + $0x30] sm:$0xf]
    %v69 = vld [vmem:[#allocation5 + $0x34] sm:$0xf]
    %v70 = vld [vmem:[#allocation5 + $0x38] sm:$0xf]
    %v71 = vld [vmem:[#allocation5 + $0x3c] sm:$0xf]
    %v88 = vunpack.c.l.b16 %v56
    %v89 = vunpack.c.l.b16 %v57
    %v90 = vunpack.c.l.b16 %v58
    %v91 = vunpack.c.l.b16 %v59
    %v92 = vunpack.c.l.b16 %v60
    %v93 = vunpack.c.l.b16 %v61
    %v94 = vunpack.c.l.b16 %v62
    %v95 = vunpack.c.l.b16 %v63
    %v96 = vunpack.c.l.b16 %v64
    %v97 = vunpack.c.l.b16 %v65
    %v98 = vunpack.c.l.b16 %v66
    %v99 = vunpack.c.l.b16 %v67
    %v100 = vunpack.c.l.b16 %v68
    %v101 = vunpack.c.l.b16 %v69
    %v102 = vunpack.c.l.b16 %v70
    %v103 = vunpack.c.l.b16 %v71
    %v104 = vpack.c.b16 %v89, %v88
    %v105 = vpack.c.b16 %v91, %v90
    %v106 = vpack.c.b16 %v93, %v92
    %v107 = vpack.c.b16 %v95, %v94
    %v108 = vpack.c.b16 %v97, %v96
    %v109 = vpack.c.b16 %v99, %v98
    %v110 = vpack.c.b16 %v101, %v100
    %v111 = vpack.c.b16 %v103, %v102
    %120 = vmatprep.subr.bf16.mxu0 0
    %121 = vmatpush1.bf16.xpose.msra.mxu0 %v104
    %122 = vmatprep.subr.bf16.mxu0 0
    %123 = vmatpush1.bf16.xpose.msra.mxu0 %v105
    %124 = vmatprep.subr.bf16.mxu0 0
    %125 = vmatpush1.bf16.xpose.msra.mxu0 %v106
    %126 = vmatprep.subr.bf16.mxu0 0
    %127 = vmatpush1.bf16.xpose.msra.mxu0 %v107
    %128 = vmatprep.subr.bf16.mxu0 0
    %129 = vmatpush1.bf16.xpose.msra.mxu0 %v108
    %130 = vmatprep.subr.bf16.mxu0 0
    %131 = vmatpush1.bf16.xpose.msra.mxu0 %v109
    %132 = vmatprep.subr.bf16.mxu0 0
    %133 = vmatpush1.bf16.xpose.msra.mxu0 %v110
    %134 = vmatprep.subr.bf16.mxu0 0
    %135 = vmatpush1.bf16.xpose.msra.mxu0 %v111
    %136 = vmatprep.subr.bf16.mxu0 0
    %137 = vmatpush1.bf16.xpose.msra.mxu0 0
    %138 = vmatprep.subr.bf16.mxu0 0
    %139 = vmatpush1.bf16.xpose.msra.mxu0 0
    %140 = vmatprep.subr.bf16.mxu0 0
    %141 = vmatpush1.bf16.xpose.msra.mxu0 0
    %142 = vmatprep.subr.bf16.mxu0 0
    %143 = vmatpush1.bf16.xpose.msra.mxu0 0
    %144 = vmatprep.subr.bf16.mxu0 0
    %145 = vmatpush1.bf16.xpose.msra.mxu0 0
    %146 = vmatprep.subr.bf16.mxu0 0
    %147 = vmatpush1.bf16.xpose.msra.mxu0 0
    %148 = vmatprep.subr.bf16.mxu0 0
    %149 = vmatpush1.bf16.xpose.msra.mxu0 0
    %150 = vmatprep.subr.bf16.mxu0 0
    %151 = vmatpush1.bf16.xpose.msra.mxu0 0
    %152 = vmatprep.mubr.bf16.mxu0 0
    %153 = vmatmul.mubr.bf16.gmra.mrb[0].mxu0 %v55
    %v154 = vpop.f32.mrb[0].mxu0
    %v155 = vadd.f32 0.0, %v154
    %v156 = vpop.f32.mrb[0].mxu0
    %v157 = vpop.f32.mrb[0].mxu0
    %v158 = vpop.f32.mrb[0].mxu0
    %159 = vdwg.mxu0
    %v160 = vpack.c.bf16 %v155, %v155
    %v161 = vld [vmem:[#allocation7] sm:$0xf]
    %v162 = vld [vmem:[#allocation7 + $0x4] sm:$0xf]
    %v163 = vld [vmem:[#allocation7 + $0x8] sm:$0xf]
    %v164 = vld [vmem:[#allocation7 + $0xc] sm:$0xf]
    %v165 = vld [vmem:[#allocation7 + $0x10] sm:$0xf]
    %v166 = vld [vmem:[#allocation7 + $0x14] sm:$0xf]
    %v167 = vld [vmem:[#allocation7 + $0x18] sm:$0xf]
    %v168 = vld [vmem:[#allocation7 + $0x1c] sm:$0xf]
    %v169 = vld [vmem:[#allocation7 + $0x20] sm:$0xf]
    %v170 = vld [vmem:[#allocation7 + $0x24] sm:$0xf]
    %v171 = vld [vmem:[#allocation7 + $0x28] sm:$0xf]
    %v172 = vld [vmem:[#allocation7 + $0x2c] sm:$0xf]
    %v173 = vld [vmem:[#allocation7 + $0x30] sm:$0xf]
    %v174 = vld [vmem:[#allocation7 + $0x34] sm:$0xf]
    %v175 = vld [vmem:[#allocation7 + $0x38] sm:$0xf]
    %v176 = vld [vmem:[#allocation7 + $0x3c] sm:$0xf]
    %v193 = vunpack.c.l.b16 %v161
    %v194 = vunpack.c.l.b16 %v162
    %v195 = vunpack.c.l.b16 %v163
    %v196 = vunpack.c.l.b16 %v164
    %v197 = vunpack.c.l.b16 %v165
    %v198 = vunpack.c.l.b16 %v166
    %v199 = vunpack.c.l.b16 %v167
    %v200 = vunpack.c.l.b16 %v168
    %v201 = vunpack.c.l.b16 %v169
    %v202 = vunpack.c.l.b16 %v170
    %v203 = vunpack.c.l.b16 %v171
    %v204 = vunpack.c.l.b16 %v172
    %v205 = vunpack.c.l.b16 %v173
    %v206 = vunpack.c.l.b16 %v174
    %v207 = vunpack.c.l.b16 %v175
    %v208 = vunpack.c.l.b16 %v176
    %v209 = vpack.c.b16 %v194, %v193
    %v210 = vpack.c.b16 %v196, %v195
    %v211 = vpack.c.b16 %v198, %v197
    %v212 = vpack.c.b16 %v200, %v199
    %v213 = vpack.c.b16 %v202, %v201
    %v214 = vpack.c.b16 %v204, %v203
    %v215 = vpack.c.b16 %v206, %v205
    %v216 = vpack.c.b16 %v208, %v207
    %225 = vmatprep.subr.bf16.mxu0 0
    %226 = vmatpush1.bf16.xpose.msra.mxu0 %v209
    %227 = vmatprep.subr.bf16.mxu0 0
    %228 = vmatpush1.bf16.xpose.msra.mxu0 %v210
    %229 = vmatprep.subr.bf16.mxu0 0
    %230 = vmatpush1.bf16.xpose.msra.mxu0 %v211
    %231 = vmatprep.subr.bf16.mxu0 0
    %232 = vmatpush1.bf16.xpose.msra.mxu0 %v212
    %233 = vmatprep.subr.bf16.mxu0 0
    %234 = vmatpush1.bf16.xpose.msra.mxu0 %v213
    %235 = vmatprep.subr.bf16.mxu0 0
    %236 = vmatpush1.bf16.xpose.msra.mxu0 %v214
    %237 = vmatprep.subr.bf16.mxu0 0
    %238 = vmatpush1.bf16.xpose.msra.mxu0 %v215
    %239 = vmatprep.subr.bf16.mxu0 0
    %240 = vmatpush1.bf16.xpose.msra.mxu0 %v216
    %241 = vmatprep.subr.bf16.mxu0 0
    %242 = vmatpush1.bf16.xpose.msra.mxu0 0
    %243 = vmatprep.subr.bf16.mxu0 0
    %244 = vmatpush1.bf16.xpose.msra.mxu0 0
    %245 = vmatprep.subr.bf16.mxu0 0
    %246 = vmatpush1.bf16.xpose.msra.mxu0 0
    %247 = vmatprep.subr.bf16.mxu0 0
    %248 = vmatpush1.bf16.xpose.msra.mxu0 0
    %249 = vmatprep.subr.bf16.mxu0 0
    %250 = vmatpush1.bf16.xpose.msra.mxu0 0
    %251 = vmatprep.subr.bf16.mxu0 0
    %252 = vmatpush1.bf16.xpose.msra.mxu0 0
    %253 = vmatprep.subr.bf16.mxu0 0
    %254 = vmatpush1.bf16.xpose.msra.mxu0 0
    %255 = vmatprep.subr.bf16.mxu0 0
    %256 = vmatpush1.bf16.xpose.msra.mxu0 0
    %257 = vmatprep.mubr.bf16.mxu0 0
    %258 = vmatmul.mubr.bf16.gmra.mrb[0].mxu0 %v160
    %v259 = vpop.f32.mrb[0].mxu0
    %v260 = vadd.f32 0.0, %v259
    %v261 = vpop.f32.mrb[0].mxu0
    %v262 = vpop.f32.mrb[0].mxu0
    %v263 = vpop.f32.mrb[0].mxu0
    %264 = vdwg.mxu0
    %265 = vst [vmem:[#allocation8] sm:$0xff] %v260
    // Predicated region
    $region26: #{tpu_custom_call.1} parent=1 // pred_check
      _
    $region27: #{tpu_custom_call.1} parent=1 // pred_check_branch
      %267 = sbr.rel (0) target = $region29
    $region28: #{tpu_custom_call.1} parent=1 // pred_region
      %s269 = ssub.s32 128, 128
      %270 = vsyncadd [#allocation4], %s269
      %s272 = sshll.u32 [#allocation8], 4
      %s273 = int_to_ptr.vmem [resolvable:$true] %s272
      %275 = dma.vmem_to_hbm [thread:$0]  %s273, 128, %s3, [#allocation4]
    $region29: #{tpu_custom_call.1} parent=1 // pred_fallthru
      _
    // Predicated region
    $region30: #{tpu_custom_call.1} parent=1 // pred_check
      _
    $region31: #{tpu_custom_call.1} parent=1 // pred_check_branch
      %277 = sbr.rel (0) target = $region33
    $region32: #{tpu_custom_call.1} parent=1 // pred_region
      %278 = dma.done [#allocation4], 128
    $region33: #{tpu_custom_call.1} parent=1 // pred_fallthru
      _
    %279 = vsyncpa [#allocation3], 1
    %280 = vsyncpa [#allocation6], 1
    %281 = vsyncpa [#allocation4], 1

</llo_original>
